<compile_context>
chip_gen: v5e
topology: v5e:2x2
jax: 0.10.0
libtpu: 0.0.40
codegen_flags: <defaults>
</compile_context>

<pallas_src>
from functools import partial

import jax
import jax.numpy as jnp
from jax import lax
from jax.experimental import pallas as pl
from jax.experimental.pallas import tpu as pltpu

OUT_PAD = 128  # lane-dense padded output width


# ----------------------------------------------------------------------------
# In-kernel helper: masked GAT attention softmax.
#   e[i,j] = LeakyReLU(a_dst[i] + a_src[j], 0.2), masked by adjacency,
#   alpha  = softmax_j(e[i, :])
# ----------------------------------------------------------------------------
def _attention_softmax(a_dst_col, a_src_row, mask):
    e = a_dst_col + a_src_row                      # [N, N] broadcast
    e = jnp.where(e > 0, e, 0.2 * e)               # LeakyReLU(0.2)
    e = jnp.where(mask, e, jnp.float32(-1e30))     # mask non-edges
    m = jnp.max(e, axis=-1, keepdims=True)
    p = jnp.exp(e - m)
    denom = jnp.sum(p, axis=-1, keepdims=True)
    # self-loops guarantee denom >= 1 -> approx reciprocal (EUP) is safe.
    return p * pl.reciprocal(denom, approx=True)


# ----------------------------------------------------------------------------
# Fused 2-layer GAT forward kernel (single invocation, everything in VMEM).
# ----------------------------------------------------------------------------
def _gat2_kernel(x_ref, adj_ref, w0aug_ref, vsrc0_ref, gamma_ref, beta_ref,
                 w1aug_ref, vsrc1_ref, b1_ref, out_ref, hid_ref,
                 *, heads, hidden, out_ch):
    H, C = heads, hidden
    HC = H * C

    mask = adj_ref[...] != 0                       # int8 adjacency -> bool
    x = x_ref[...]                                 # bf16 [N, F_in]

    # ---- layer 0: GATConv(F_in -> C, heads=H, concat=True) ----------------
    # One MXU call for all heads' features AND the folded a_dst columns.
    proj0 = jnp.dot(x, w0aug_ref[...],
                    preferred_element_type=jnp.float32)      # [N, H*C + H] f32
    feat0 = proj0[:, :HC].astype(jnp.bfloat16)               # [N, H*C]
    a_dst0 = proj0[:, HC:HC + H]                              # [N, H] f32
    # Source-attention scores directly in row layout [H, N].
    a_src0 = lax.dot_general(vsrc0_ref[...], x,
                             (((1,), (1,)), ((), ())),
                             preferred_element_type=jnp.float32)

    for h in range(H):                              # static unroll (H is tiny)
        alpha = _attention_softmax(a_dst0[:, h:h + 1],
                                   a_src0[h:h + 1, :], mask)  # [N, N] f32
        hid_ref[:, h * C:(h + 1) * C] = jnp.dot(
            alpha.astype(jnp.bfloat16), feat0[:, h * C:(h + 1) * C],
            preferred_element_type=jnp.float32)
    # NOTE: layer-0 bias omitted on purpose: it is exactly cancelled by the
    # training-mode BatchNorm mean subtraction below.

    hid = hid_ref[...]                                        # [N, H*C] f32

    # ---- BatchNorm1d (training-style batch stats, eps=1e-5), one pass ------
    inv_n = jnp.float32(1.0 / hid.shape[0])
    s = jnp.sum(hid, axis=0, keepdims=True)
    ss = jnp.sum(hid * hid, axis=0, keepdims=True)
    mean = s * inv_n
    var = ss * inv_n - mean * mean
    y = gamma_ref[...] * (hid - mean) * lax.rsqrt(var + 1e-5) + beta_ref[...]
    # ELU; exp argument clamped to <= 0 so the dead branch never overflows.
    h1 = jnp.where(y > 0, y, jnp.exp(jnp.minimum(y, 0.0)) - 1.0)
    h1_bf = h1.astype(jnp.bfloat16)
    # TODO(synk): training-mode dropout (pltpu.prng_*) not applied; eval-mode
    # identity kept for a deterministic forward.

    # ---- layer 1: GATConv(H*C -> out, heads=1, concat=False) ---------------
    # Padded-to-128-lane augmented matmul: cols [0,out) = features,
    # col out = folded a_dst, remaining cols are zero.
    proj1 = jnp.dot(h1_bf, w1aug_ref[...],
                    preferred_element_type=jnp.float32)       # [N, OUT_PAD]
    a_dst1 = proj1[:, out_ch:out_ch + 1]                      # [N, 1]
    a_src1 = lax.dot_general(vsrc1_ref[...], h1_bf,
                             (((1,), (1,)), ((), ())),
                             preferred_element_type=jnp.float32)  # [1, N]
    alpha1 = _attention_softmax(a_dst1, a_src1, mask)
    out = jnp.dot(alpha1.astype(jnp.bfloat16), proj1.astype(jnp.bfloat16),
                  preferred_element_type=jnp.float32) + b1_ref[...]
    out_ref[...] = out.astype(out_ref.dtype)       # lane-dense [N, 128] store


# ----------------------------------------------------------------------------
# Wrapper: fold attention projections + head concat into the weights (bf16),
# then launch the single fused kernel and slice the padded output.
# ----------------------------------------------------------------------------
@jax.jit
def gat_forward(x, adj, layer0, bn0, layer1):
    w0, as0, ad0, _b0 = layer0         # [H,F,C], [H,1,C], [H,1,C], [H,1,C]
    gamma, beta = bn0                  # [1, H*C] each
    w1, as1, ad1, b1 = layer1          # [1,D,out], [1,1,out] x3

    H, F_in, C = w0.shape
    N = x.shape[0]
    D = H * C
    out_ch = w1.shape[-1]
    assert out_ch + 1 <= OUT_PAD

    # --- one-time parameter folding (cheap, wrapper-side) -------------------
    # Layer 0: [F_in, H*C] concat-layout weights, plus H folded a_dst columns.
    w0_all = jnp.transpose(w0, (1, 0, 2)).reshape(F_in, D)        # [F_in, H*C]
    vdst0_cols = jnp.einsum('hfc,hc->fh', w0, ad0[:, 0, :])       # [F_in, H]
    w0_aug = jnp.concatenate([w0_all, vdst0_cols], axis=1)        # [F_in, D+H]
    vsrc0 = jnp.einsum('hfc,hc->hf', w0, as0[:, 0, :])            # [H, F_in]
    # NOTE: layer-0 bias (_b0) is intentionally dropped: it is a no-op under
    # training-mode BatchNorm (removed by the mean subtraction).

    # Layer 1: pad weights / bias to 128 lanes, fold a_dst as column `out_ch`.
    w1_m = w1[0]                                                  # [D, out]
    vdst1_col = w1_m @ ad1[0, 0, :]                               # [D]
    w1_aug = jnp.zeros((D, OUT_PAD), jnp.float32)
    w1_aug = w1_aug.at[:, :out_ch].set(w1_m).at[:, out_ch].set(vdst1_col)
    vsrc1 = (w1_m @ as1[0, 0, :]).reshape(1, D)                   # [1, D]
    b1_pad = jnp.zeros((1, OUT_PAD), jnp.float32)
    b1_pad = b1_pad.at[:, :out_ch].set(b1.reshape(1, out_ch))

    operands = [
        x.astype(jnp.bfloat16),                  # bf16 into the MXU
        (adj != 0).astype(jnp.int8),             # int8 adjacency (4x less DMA)
        w0_aug.astype(jnp.bfloat16),
        vsrc0.astype(jnp.bfloat16),
        gamma, beta,
        w1_aug.astype(jnp.bfloat16),
        vsrc1.astype(jnp.bfloat16),
        b1_pad,
    ]

    def full_spec(shape):
        return pl.BlockSpec(shape, lambda i: (0,) * len(shape))

    out_padded = pl.pallas_call(
        partial(_gat2_kernel, heads=H, hidden=C, out_ch=out_ch),
        out_shape=jax.ShapeDtypeStruct((N, OUT_PAD), jnp.float32),
        grid=(1,),
        in_specs=[full_spec(op.shape) for op in operands],
        out_specs=full_spec((N, OUT_PAD)),
        scratch_shapes=[pltpu.VMEM((N, D), jnp.float32)],   # hidden activation
        compiler_params=pltpu.CompilerParams(
            dimension_semantics=("arbitrary",)),
    )(*operands)
    return out_padded[:, :out_ch]


if __name__ == "__main__":
    key = jax.random.PRNGKey(0)
    N = 64            # nodes
    in_channels = 16
    hidden = 32
    heads = 2
    out_channels = 8
    # num_layers = 2 -> the `range(num_layers - 2)` loop in the module is empty

    ks = jax.random.split(key, 12)
    x = jax.random.normal(ks[0], (N, in_channels), jnp.float32)

    # random symmetric adjacency + self loops (add_self_loops=True)
    logits = jax.random.uniform(ks[1], (N, N))
    a = (logits < 0.08).astype(jnp.float32)
    adj = jnp.maximum(a, a.T)
    adj = jnp.maximum(adj, jnp.eye(N, dtype=jnp.float32))

    # layer 0: GATConv(in_channels -> hidden, heads=heads, concat=True)
    w0 = 0.2 * jax.random.normal(ks[2], (heads, in_channels, hidden), jnp.float32)
    as0 = 0.2 * jax.random.normal(ks[3], (heads, 1, hidden), jnp.float32)
    ad0 = 0.2 * jax.random.normal(ks[4], (heads, 1, hidden), jnp.float32)
    b0 = 0.1 * jax.random.normal(ks[5], (heads, 1, hidden), jnp.float32)

    # BatchNorm1d(hidden * heads)
    gamma = 1.0 + 0.1 * jax.random.normal(ks[6], (1, hidden * heads), jnp.float32)
    beta = 0.1 * jax.random.normal(ks[7], (1, hidden * heads), jnp.float32)

    # final layer: GATConv(hidden*heads -> out_channels, heads=1, concat=False)
    w1 = 0.2 * jax.random.normal(ks[8], (1, hidden * heads, out_channels), jnp.float32)
    as1 = 0.2 * jax.random.normal(ks[9], (1, 1, out_channels), jnp.float32)
    ad1 = 0.2 * jax.random.normal(ks[10], (1, 1, out_channels), jnp.float32)
    b1 = 0.1 * jax.random.normal(ks[11], (1, 1, out_channels), jnp.float32)

    out = gat_forward(x, adj, (w0, as0, ad0, b0), (gamma, beta),
                      (w1, as1, ad1, b1))
    jax.block_until_ready(out)
    assert out.shape == (N, out_channels)
    assert bool(jnp.all(jnp.isfinite(out)))
    print("KERNEL_OK")
</pallas_src>

<mosaic_0001>
module attributes {stable_mosaic.version = 11 : i64} {
  func.func @_gat2_kernel(%arg0: i32, %arg1: memref<64x16xbf16, #tpu.memory_space<vmem>>, %arg2: memref<64x64xi8, #tpu.memory_space<vmem>>, %arg3: memref<16x66xbf16, #tpu.memory_space<vmem>>, %arg4: memref<2x16xbf16, #tpu.memory_space<vmem>>, %arg5: memref<1x64xf32, #tpu.memory_space<vmem>>, %arg6: memref<1x64xf32, #tpu.memory_space<vmem>>, %arg7: memref<64x128xbf16, #tpu.memory_space<vmem>>, %arg8: memref<1x64xbf16, #tpu.memory_space<vmem>>, %arg9: memref<1x128xf32, #tpu.memory_space<vmem>>, %arg10: memref<64x128xf32, #tpu.memory_space<vmem>>, %arg11: memref<64x64xf32, #tpu.memory_space<vmem>>) attributes {dimension_semantics = [#tpu.dimension_semantics<arbitrary>], iteration_bounds = array<i64: 1>, scalar_prefetch = 0 : i64, scratch_operands = 1 : i64, tpu.core_type = #tpu.core_type<tc>, window_params = [{pipeline_mode = #tpu.pipeline_mode<synchronous>, transform_indices = @transform_0, window_bounds = array<i64: 64, 16>}, {pipeline_mode = #tpu.pipeline_mode<synchronous>, transform_indices = @transform_1, window_bounds = array<i64: 64, 64>}, {pipeline_mode = #tpu.pipeline_mode<synchronous>, transform_indices = @transform_2, window_bounds = array<i64: 16, 66>}, {pipeline_mode = #tpu.pipeline_mode<synchronous>, transform_indices = @transform_3, window_bounds = array<i64: 2, 16>}, {pipeline_mode = #tpu.pipeline_mode<synchronous>, transform_indices = @transform_4, window_bounds = array<i64: 1, 64>}, {pipeline_mode = #tpu.pipeline_mode<synchronous>, transform_indices = @transform_5, window_bounds = array<i64: 1, 64>}, {pipeline_mode = #tpu.pipeline_mode<synchronous>, transform_indices = @transform_6, window_bounds = array<i64: 64, 128>}, {pipeline_mode = #tpu.pipeline_mode<synchronous>, transform_indices = @transform_7, window_bounds = array<i64: 1, 64>}, {pipeline_mode = #tpu.pipeline_mode<synchronous>, transform_indices = @transform_8, window_bounds = array<i64: 1, 128>}, {pipeline_mode = #tpu.pipeline_mode<synchronous>, transform_indices = @transform_9, window_bounds = array<i64: 64, 128>}]} {
    %c0 = arith.constant 0 : index
    %c0_0 = arith.constant 0 : index
    %0 = vector.load %arg2[%c0, %c0_0] : memref<64x64xi8, #tpu.memory_space<vmem>>, vector<64x64xi8>
    %c0_i8 = arith.constant 0 : i8
    %1 = vector.broadcast %c0_i8 : i8 to vector<64x64xi8>
    %2 = arith.cmpi ne, %0, %1 : vector<64x64xi8>
    %c0_1 = arith.constant 0 : index
    %c0_2 = arith.constant 0 : index
    %3 = vector.load %arg1[%c0_1, %c0_2] : memref<64x16xbf16, #tpu.memory_space<vmem>>, vector<64x16xbf16>
    %c0_3 = arith.constant 0 : index
    %c0_4 = arith.constant 0 : index
    %4 = vector.load %arg3[%c0_3, %c0_4] : memref<16x66xbf16, #tpu.memory_space<vmem>>, vector<16x66xbf16>
    %cst = arith.constant dense<0.000000e+00> : vector<64x66xf32>
    %5 = tpu.matmul %3, %4, %cst {dimension_numbers = #tpu.dot_dimension_numbers<[1], [0], [0], [1], [0, 0, 1, 1], [], []>} : vector<64x16xbf16>, vector<16x66xbf16>, vector<64x66xf32> -> vector<64x66xf32>
    %6 = vector.extract_strided_slice %5 {offsets = [0, 0], sizes = [64, 64], strides = [1, 1]} : vector<64x66xf32> to vector<64x64xf32>
    %7 = arith.truncf %6 : vector<64x64xf32> to vector<64x64xbf16>
    %8 = vector.extract_strided_slice %5 {offsets = [0, 64], sizes = [64, 2], strides = [1, 1]} : vector<64x66xf32> to vector<64x2xf32>
    %c0_5 = arith.constant 0 : index
    %c0_6 = arith.constant 0 : index
    %9 = vector.load %arg4[%c0_5, %c0_6] : memref<2x16xbf16, #tpu.memory_space<vmem>>, vector<2x16xbf16>
    %cst_7 = arith.constant dense<0.000000e+00> : vector<2x64xf32>
    %10 = tpu.matmul %9, %3, %cst_7 {dimension_numbers = #tpu.dot_dimension_numbers<[1], [1], [0], [0], [0, 0, 1, 0], [], []>} : vector<2x16xbf16>, vector<64x16xbf16>, vector<2x64xf32> -> vector<2x64xf32>
    %11 = vector.extract_strided_slice %8 {offsets = [0, 0], sizes = [64, 1], strides = [1, 1]} : vector<64x2xf32> to vector<64x1xf32>
    %12 = vector.extract_strided_slice %10 {offsets = [0, 0], sizes = [1, 64], strides = [1, 1]} : vector<2x64xf32> to vector<1x64xf32>
    %13 = vector.broadcast %11 : vector<64x1xf32> to vector<64x64xf32>
    %14 = vector.broadcast %12 : vector<1x64xf32> to vector<64x64xf32>
    %15 = arith.addf %13, %14 : vector<64x64xf32>
    %cst_8 = arith.constant 0.000000e+00 : f32
    %16 = vector.broadcast %cst_8 : f32 to vector<64x64xf32>
    %17 = arith.cmpf ogt, %15, %16 : vector<64x64xf32>
    %cst_9 = arith.constant 2.000000e-01 : f32
    %18 = vector.broadcast %cst_9 : f32 to vector<64x64xf32>
    %19 = arith.mulf %18, %15 : vector<64x64xf32>
    %20 = arith.select %17, %15, %19 : vector<64x64xi1>, vector<64x64xf32>
    %cst_10 = arith.constant -1.000000e+30 : f32
    %21 = vector.broadcast %cst_10 : f32 to vector<64x64xf32>
    %22 = arith.select %2, %20, %21 : vector<64x64xi1>, vector<64x64xf32>
    %cst_11 = arith.constant dense<0xFF800000> : vector<64xf32>
    %23 = vector.multi_reduction <maximumf>, %22, %cst_11 [1] : vector<64x64xf32> to vector<64xf32>
    %24 = vector.shape_cast %23 : vector<64xf32> to vector<64x1xf32>
    %25 = vector.broadcast %24 : vector<64x1xf32> to vector<64x64xf32>
    %26 = arith.subf %22, %25 : vector<64x64xf32>
    %27 = math.exp %26 : vector<64x64xf32>
    %cst_12 = arith.constant dense<0.000000e+00> : vector<64xf32>
    %28 = vector.multi_reduction <add>, %27, %cst_12 [1] : vector<64x64xf32> to vector<64xf32>
    %29 = vector.shape_cast %28 : vector<64xf32> to vector<64x1xf32>
    %30 = tpu.reciprocal %29 {approx = true} : vector<64x1xf32> -> vector<64x1xf32>
    %31 = vector.broadcast %30 : vector<64x1xf32> to vector<64x64xf32>
    %32 = arith.mulf %27, %31 : vector<64x64xf32>
    %33 = arith.truncf %32 : vector<64x64xf32> to vector<64x64xbf16>
    %34 = vector.extract_strided_slice %7 {offsets = [0, 0], sizes = [64, 32], strides = [1, 1]} : vector<64x64xbf16> to vector<64x32xbf16>
    %cst_13 = arith.constant dense<0.000000e+00> : vector<64x32xf32>
    %35 = tpu.matmul %33, %34, %cst_13 {dimension_numbers = #tpu.dot_dimension_numbers<[1], [0], [0], [1], [0, 0, 1, 1], [], []>} : vector<64x64xbf16>, vector<64x32xbf16>, vector<64x32xf32> -> vector<64x32xf32>
    %c0_14 = arith.constant 0 : index
    %c0_15 = arith.constant 0 : index
    %36 = vector.load %arg11[%c0_14, %c0_15] : memref<64x64xf32, #tpu.memory_space<vmem>>, vector<64x32xf32>
    tpu.vector_store %arg11[%c0_14, %c0_15], %35 {strides = array<i32>} : memref<64x64xf32, #tpu.memory_space<vmem>>, vector<64x32xf32>,
    %37 = vector.extract_strided_slice %8 {offsets = [0, 1], sizes = [64, 1], strides = [1, 1]} : vector<64x2xf32> to vector<64x1xf32>
    %38 = vector.extract_strided_slice %10 {offsets = [1, 0], sizes = [1, 64], strides = [1, 1]} : vector<2x64xf32> to vector<1x64xf32>
    %39 = vector.broadcast %37 : vector<64x1xf32> to vector<64x64xf32>
    %40 = vector.broadcast %38 : vector<1x64xf32> to vector<64x64xf32>
    %41 = arith.addf %39, %40 : vector<64x64xf32>
    %cst_16 = arith.constant 0.000000e+00 : f32
    %42 = vector.broadcast %cst_16 : f32 to vector<64x64xf32>
    %43 = arith.cmpf ogt, %41, %42 : vector<64x64xf32>
    %cst_17 = arith.constant 2.000000e-01 : f32
    %44 = vector.broadcast %cst_17 : f32 to vector<64x64xf32>
    %45 = arith.mulf %44, %41 : vector<64x64xf32>
    %46 = arith.select %43, %41, %45 : vector<64x64xi1>, vector<64x64xf32>
    %cst_18 = arith.constant -1.000000e+30 : f32
    %47 = vector.broadcast %cst_18 : f32 to vector<64x64xf32>
    %48 = arith.select %2, %46, %47 : vector<64x64xi1>, vector<64x64xf32>
    %cst_19 = arith.constant dense<0xFF800000> : vector<64xf32>
    %49 = vector.multi_reduction <maximumf>, %48, %cst_19 [1] : vector<64x64xf32> to vector<64xf32>
    %50 = vector.shape_cast %49 : vector<64xf32> to vector<64x1xf32>
    %51 = vector.broadcast %50 : vector<64x1xf32> to vector<64x64xf32>
    %52 = arith.subf %48, %51 : vector<64x64xf32>
    %53 = math.exp %52 : vector<64x64xf32>
    %cst_20 = arith.constant dense<0.000000e+00> : vector<64xf32>
    %54 = vector.multi_reduction <add>, %53, %cst_20 [1] : vector<64x64xf32> to vector<64xf32>
    %55 = vector.shape_cast %54 : vector<64xf32> to vector<64x1xf32>
    %56 = tpu.reciprocal %55 {approx = true} : vector<64x1xf32> -> vector<64x1xf32>
    %57 = vector.broadcast %56 : vector<64x1xf32> to vector<64x64xf32>
    %58 = arith.mulf %53, %57 : vector<64x64xf32>
    %59 = arith.truncf %58 : vector<64x64xf32> to vector<64x64xbf16>
    %60 = vector.extract_strided_slice %7 {offsets = [0, 32], sizes = [64, 32], strides = [1, 1]} : vector<64x64xbf16> to vector<64x32xbf16>
    %cst_21 = arith.constant dense<0.000000e+00> : vector<64x32xf32>
    %61 = tpu.matmul %59, %60, %cst_21 {dimension_numbers = #tpu.dot_dimension_numbers<[1], [0], [0], [1], [0, 0, 1, 1], [], []>} : vector<64x64xbf16>, vector<64x32xbf16>, vector<64x32xf32> -> vector<64x32xf32>
    %c0_22 = arith.constant 0 : index
    %c32 = arith.constant 32 : index
    %62 = vector.load %arg11[%c0_22, %c32] : memref<64x64xf32, #tpu.memory_space<vmem>>, vector<64x32xf32>
    tpu.vector_store %arg11[%c0_22, %c32], %61 {strides = array<i32>} : memref<64x64xf32, #tpu.memory_space<vmem>>, vector<64x32xf32>,
    %c0_23 = arith.constant 0 : index
    %c0_24 = arith.constant 0 : index
    %63 = vector.load %arg11[%c0_23, %c0_24] : memref<64x64xf32, #tpu.memory_space<vmem>>, vector<64x64xf32>
    %cst_25 = arith.constant dense<0.000000e+00> : vector<64xf32>
    %64 = vector.multi_reduction <add>, %63, %cst_25 [0] : vector<64x64xf32> to vector<64xf32>
    %65 = vector.shape_cast %64 : vector<64xf32> to vector<1x64xf32>
    %66 = arith.mulf %63, %63 : vector<64x64xf32>
    %cst_26 = arith.constant dense<0.000000e+00> : vector<64xf32>
    %67 = vector.multi_reduction <add>, %66, %cst_26 [0] : vector<64x64xf32> to vector<64xf32>
    %68 = vector.shape_cast %67 : vector<64xf32> to vector<1x64xf32>
    %cst_27 = arith.constant 1.562500e-02 : f32
    %69 = vector.broadcast %cst_27 : f32 to vector<1x64xf32>
    %70 = arith.mulf %65, %69 : vector<1x64xf32>
    %cst_28 = arith.constant 1.562500e-02 : f32
    %71 = vector.broadcast %cst_28 : f32 to vector<1x64xf32>
    %72 = arith.mulf %68, %71 : vector<1x64xf32>
    %73 = arith.mulf %70, %70 : vector<1x64xf32>
    %74 = arith.subf %72, %73 : vector<1x64xf32>
    %c0_29 = arith.constant 0 : index
    %c0_30 = arith.constant 0 : index
    %75 = vector.load %arg5[%c0_29, %c0_30] : memref<1x64xf32, #tpu.memory_space<vmem>>, vector<1x64xf32>
    %76 = vector.broadcast %70 : vector<1x64xf32> to vector<64x64xf32>
    %77 = arith.subf %63, %76 : vector<64x64xf32>
    %78 = vector.broadcast %75 : vector<1x64xf32> to vector<64x64xf32>
    %79 = arith.mulf %78, %77 : vector<64x64xf32>
    %cst_31 = arith.constant 9.99999974E-6 : f32
    %80 = vector.broadcast %cst_31 : f32 to vector<1x64xf32>
    %81 = arith.addf %74, %80 : vector<1x64xf32>
    %82 = math.rsqrt %81 : vector<1x64xf32>
    %83 = vector.broadcast %82 : vector<1x64xf32> to vector<64x64xf32>
    %84 = arith.mulf %79, %83 : vector<64x64xf32>
    %c0_32 = arith.constant 0 : index
    %c0_33 = arith.constant 0 : index
    %85 = vector.load %arg6[%c0_32, %c0_33] : memref<1x64xf32, #tpu.memory_space<vmem>>, vector<1x64xf32>
    %86 = vector.broadcast %85 : vector<1x64xf32> to vector<64x64xf32>
    %87 = arith.addf %84, %86 : vector<64x64xf32>
    %cst_34 = arith.constant 0.000000e+00 : f32
    %88 = vector.broadcast %cst_34 : f32 to vector<64x64xf32>
    %89 = arith.cmpf ogt, %87, %88 : vector<64x64xf32>
    %cst_35 = arith.constant 0.000000e+00 : f32
    %90 = vector.broadcast %cst_35 : f32 to vector<64x64xf32>
    %91 = arith.minimumf %87, %90 : vector<64x64xf32>
    %92 = math.exp %91 : vector<64x64xf32>
    %cst_36 = arith.constant 1.000000e+00 : f32
    %93 = vector.broadcast %cst_36 : f32 to vector<64x64xf32>
    %94 = arith.subf %92, %93 : vector<64x64xf32>
    %95 = arith.select %89, %87, %94 : vector<64x64xi1>, vector<64x64xf32>
    %96 = arith.truncf %95 : vector<64x64xf32> to vector<64x64xbf16>
    %c0_37 = arith.constant 0 : index
    %c0_38 = arith.constant 0 : index
    %97 = vector.load %arg7[%c0_37, %c0_38] : memref<64x128xbf16, #tpu.memory_space<vmem>>, vector<64x128xbf16>
    %cst_39 = arith.constant dense<0.000000e+00> : vector<64x128xf32>
    %98 = tpu.matmul %96, %97, %cst_39 {dimension_numbers = #tpu.dot_dimension_numbers<[1], [0], [0], [1], [0, 0, 1, 1], [], []>} : vector<64x64xbf16>, vector<64x128xbf16>, vector<64x128xf32> -> vector<64x128xf32>
    %99 = vector.extract_strided_slice %98 {offsets = [0, 8], sizes = [64, 1], strides = [1, 1]} : vector<64x128xf32> to vector<64x1xf32>
    %c0_40 = arith.constant 0 : index
    %c0_41 = arith.constant 0 : index
    %100 = vector.load %arg8[%c0_40, %c0_41] : memref<1x64xbf16, #tpu.memory_space<vmem>>, vector<1x64xbf16>
    %cst_42 = arith.constant dense<0.000000e+00> : vector<1x64xf32>
    %101 = tpu.matmul %100, %96, %cst_42 {dimension_numbers = #tpu.dot_dimension_numbers<[1], [1], [0], [0], [0, 0, 1, 0], [], []>} : vector<1x64xbf16>, vector<64x64xbf16>, vector<1x64xf32> -> vector<1x64xf32>
    %102 = vector.broadcast %99 : vector<64x1xf32> to vector<64x64xf32>
    %103 = vector.broadcast %101 : vector<1x64xf32> to vector<64x64xf32>
    %104 = arith.addf %102, %103 : vector<64x64xf32>
    %cst_43 = arith.constant 0.000000e+00 : f32
    %105 = vector.broadcast %cst_43 : f32 to vector<64x64xf32>
    %106 = arith.cmpf ogt, %104, %105 : vector<64x64xf32>
    %cst_44 = arith.constant 2.000000e-01 : f32
    %107 = vector.broadcast %cst_44 : f32 to vector<64x64xf32>
    %108 = arith.mulf %107, %104 : vector<64x64xf32>
    %109 = arith.select %106, %104, %108 : vector<64x64xi1>, vector<64x64xf32>
    %cst_45 = arith.constant -1.000000e+30 : f32
    %110 = vector.broadcast %cst_45 : f32 to vector<64x64xf32>
    %111 = arith.select %2, %109, %110 : vector<64x64xi1>, vector<64x64xf32>
    %cst_46 = arith.constant dense<0xFF800000> : vector<64xf32>
    %112 = vector.multi_reduction <maximumf>, %111, %cst_46 [1] : vector<64x64xf32> to vector<64xf32>
    %113 = vector.shape_cast %112 : vector<64xf32> to vector<64x1xf32>
    %114 = vector.broadcast %113 : vector<64x1xf32> to vector<64x64xf32>
    %115 = arith.subf %111, %114 : vector<64x64xf32>
    %116 = math.exp %115 : vector<64x64xf32>
    %cst_47 = arith.constant dense<0.000000e+00> : vector<64xf32>
    %117 = vector.multi_reduction <add>, %116, %cst_47 [1] : vector<64x64xf32> to vector<64xf32>
    %118 = vector.shape_cast %117 : vector<64xf32> to vector<64x1xf32>
    %119 = tpu.reciprocal %118 {approx = true} : vector<64x1xf32> -> vector<64x1xf32>
    %120 = vector.broadcast %119 : vector<64x1xf32> to vector<64x64xf32>
    %121 = arith.mulf %116, %120 : vector<64x64xf32>
    %122 = arith.truncf %121 : vector<64x64xf32> to vector<64x64xbf16>
    %123 = arith.truncf %98 : vector<64x128xf32> to vector<64x128xbf16>
    %cst_48 = arith.constant dense<0.000000e+00> : vector<64x128xf32>
    %124 = tpu.matmul %122, %123, %cst_48 {dimension_numbers = #tpu.dot_dimension_numbers<[1], [0], [0], [1], [0, 0, 1, 1], [], []>} : vector<64x64xbf16>, vector<64x128xbf16>, vector<64x128xf32> -> vector<64x128xf32>
    %c0_49 = arith.constant 0 : index
    %c0_50 = arith.constant 0 : index
    %125 = vector.load %arg9[%c0_49, %c0_50] : memref<1x128xf32, #tpu.memory_space<vmem>>, vector<1x128xf32>
    %126 = vector.broadcast %125 : vector<1x128xf32> to vector<64x128xf32>
    %127 = arith.addf %124, %126 : vector<64x128xf32>
    %c0_51 = arith.constant 0 : index
    %c0_52 = arith.constant 0 : index
    %128 = vector.load %arg10[%c0_51, %c0_52] : memref<64x128xf32, #tpu.memory_space<vmem>>, vector<64x128xf32>
    tpu.vector_store %arg10[%c0_51, %c0_52], %127 {strides = array<i32>} : memref<64x128xf32, #tpu.memory_space<vmem>>, vector<64x128xf32>,
    return
  }
  func.func @transform_0(%arg0: i32) -> (i32, i32) {
    %c0_i32 = arith.constant 0 : i32
    %c0_i32_0 = arith.constant 0 : i32
    %c0_i32_1 = arith.constant 0 : i32
    return %c0_i32, %c0_i32_0 : i32, i32
  }
  func.func @transform_1(%arg0: i32) -> (i32, i32) {
    %c0_i32 = arith.constant 0 : i32
    %c0_i32_0 = arith.constant 0 : i32
    %c0_i32_1 = arith.constant 0 : i32
    return %c0_i32, %c0_i32_0 : i32, i32
  }
  func.func @transform_2(%arg0: i32) -> (i32, i32) {
    %c0_i32 = arith.constant 0 : i32
    %c0_i32_0 = arith.constant 0 : i32
    %c0_i32_1 = arith.constant 0 : i32
    return %c0_i32, %c0_i32_0 : i32, i32
  }
  func.func @transform_3(%arg0: i32) -> (i32, i32) {
    %c0_i32 = arith.constant 0 : i32
    %c0_i32_0 = arith.constant 0 : i32
    %c0_i32_1 = arith.constant 0 : i32
    return %c0_i32, %c0_i32_0 : i32, i32
  }
  func.func @transform_4(%arg0: i32) -> (i32, i32) {
    %c0_i32 = arith.constant 0 : i32
    %c0_i32_0 = arith.constant 0 : i32
    %c0_i32_1 = arith.constant 0 : i32
    return %c0_i32, %c0_i32_0 : i32, i32
  }
  func.func @transform_5(%arg0: i32) -> (i32, i32) {
    %c0_i32 = arith.constant 0 : i32
    %c0_i32_0 = arith.constant 0 : i32
    %c0_i32_1 = arith.constant 0 : i32
    return %c0_i32, %c0_i32_0 : i32, i32
  }
  func.func @transform_6(%arg0: i32) -> (i32, i32) {
    %c0_i32 = arith.constant 0 : i32
    %c0_i32_0 = arith.constant 0 : i32
    %c0_i32_1 = arith.constant 0 : i32
    return %c0_i32, %c0_i32_0 : i32, i32
  }
  func.func @transform_7(%arg0: i32) -> (i32, i32) {
    %c0_i32 = arith.constant 0 : i32
    %c0_i32_0 = arith.constant 0 : i32
    %c0_i32_1 = arith.constant 0 : i32
    return %c0_i32, %c0_i32_0 : i32, i32
  }
  func.func @transform_8(%arg0: i32) -> (i32, i32) {
    %c0_i32 = arith.constant 0 : i32
    %c0_i32_0 = arith.constant 0 : i32
    %c0_i32_1 = arith.constant 0 : i32
    return %c0_i32, %c0_i32_0 : i32, i32
  }
  func.func @transform_9(%arg0: i32) -> (i32, i32) {
    %c0_i32 = arith.constant 0 : i32
    %c0_i32_0 = arith.constant 0 : i32
    %c0_i32_1 = arith.constant 0 : i32
    return %c0_i32, %c0_i32_0 : i32, i32
  }
}

</mosaic_0001>

<llo_original>
// kernel: gat_forward.1
$region0: #{gat_forward.1}
  #allocation0 [shape = 'u32[]', space=smem, size = 0x4, offset = 0x4, fixed_abs, tag = 'smem constant byte address 0x4 - core index']
  #allocation1 [shape = 'u32[72,128]{1,0:T(1,128)}', space=vmem, size = 0x9000, scoped, tag = 'internal scratch']
  #allocation2 [shape = 'f32[64,64]{1,0:T(8,128)}', space=vmem, size = 0x8000, scoped, tag = 'scratch operand']
  %s0 = inlined_call_operand.vmem [shape: bf16[64,16], index: 0, kind: input, shape index: {}]
  %s1 = inlined_call_operand.vmem [shape: s8[64,64], index: 1, kind: input, shape index: {}]
  %s2 = inlined_call_operand.vmem [shape: bf16[16,66], index: 2, kind: input, shape index: {}]
  %s3 = inlined_call_operand.vmem [shape: bf16[2,16], index: 3, kind: input, shape index: {}]
  %s4 = inlined_call_operand.vmem [shape: f32[1,64], index: 4, kind: input, shape index: {}]
  %s5 = inlined_call_operand.vmem [shape: f32[1,64], index: 5, kind: input, shape index: {}]
  %s6 = inlined_call_operand.vmem [shape: bf16[64,128], index: 6, kind: input, shape index: {}]
  %s7 = inlined_call_operand.vmem [shape: bf16[1,64], index: 7, kind: input, shape index: {}]
  %s8 = inlined_call_operand.vmem [shape: f32[1,128], index: 8, kind: input, shape index: {}]
  %s9 = inlined_call_operand.vmem [shape: f32[64,128], index: 9, kind: output, shape index: {}]
  %s10 = sld [smem:[#allocation0]]
  $region46: #{gat_forward.1} parent=0
    _
  %s12 = ssub.s32 1, %s10
  %s13 = scalar_select 0, %s12, %s10
  // Predicated region
  $region2: #{gat_forward.1} parent=0 // pred_check
    _
  $region3: #{gat_forward.1} parent=0 // pred_check_branch
    %15 = sbr.rel (0) target = $region5
  $region4: #{gat_forward.1} parent=0 // pred_region
    _
  $region5: #{gat_forward.1} parent=0 // pred_fallthru
    _
  // Predicated region
  $region6: #{gat_forward.1} parent=0 // pred_check
    _
  $region7: #{gat_forward.1} parent=0 // pred_check_branch
    %17 = sbr.rel (0) target = $region9
  $region8: #{gat_forward.1} parent=0 // pred_region
    _
  $region9: #{gat_forward.1} parent=0 // pred_fallthru
    _
  // Predicated region
  $region10: #{gat_forward.1} parent=0 // pred_check
    _
  $region11: #{gat_forward.1} parent=0 // pred_check_branch
    %19 = sbr.rel (0) target = $region13
  $region12: #{gat_forward.1} parent=0 // pred_region
    _
  $region13: #{gat_forward.1} parent=0 // pred_fallthru
    _
  // Predicated region
  $region14: #{gat_forward.1} parent=0 // pred_check
    _
  $region15: #{gat_forward.1} parent=0 // pred_check_branch
    %21 = sbr.rel (0) target = $region17
  $region16: #{gat_forward.1} parent=0 // pred_region
    _
  $region17: #{gat_forward.1} parent=0 // pred_fallthru
    _
  // Predicated region
  $region18: #{gat_forward.1} parent=0 // pred_check
    _
  $region19: #{gat_forward.1} parent=0 // pred_check_branch
    %23 = sbr.rel (0) target = $region21
  $region20: #{gat_forward.1} parent=0 // pred_region
    _
  $region21: #{gat_forward.1} parent=0 // pred_fallthru
    _
  // Predicated region
  $region22: #{gat_forward.1} parent=0 // pred_check
    _
  $region23: #{gat_forward.1} parent=0 // pred_check_branch
    %25 = sbr.rel (0) target = $region25
  $region24: #{gat_forward.1} parent=0 // pred_region
    _
  $region25: #{gat_forward.1} parent=0 // pred_fallthru
    _
  // Predicated region
  $region26: #{gat_forward.1} parent=0 // pred_check
    _
  $region27: #{gat_forward.1} parent=0 // pred_check_branch
    %27 = sbr.rel (0) target = $region29
  $region28: #{gat_forward.1} parent=0 // pred_region
    _
  $region29: #{gat_forward.1} parent=0 // pred_fallthru
    _
  // Predicated region
  $region30: #{gat_forward.1} parent=0 // pred_check
    _
  $region31: #{gat_forward.1} parent=0 // pred_check_branch
    %29 = sbr.rel (0) target = $region33
  $region32: #{gat_forward.1} parent=0 // pred_region
    _
  $region33: #{gat_forward.1} parent=0 // pred_fallthru
    _
  // Predicated region
  $region34: #{gat_forward.1} parent=0 // pred_check
    _
  $region35: #{gat_forward.1} parent=0 // pred_check_branch
    %31 = sbr.rel (0) target = $region37
  $region36: #{gat_forward.1} parent=0 // pred_region
    _
  $region37: #{gat_forward.1} parent=0 // pred_fallthru
    _
  %v35 = vld [vmem:[%s1] sm:$0xff]
  %v36 = vld [vmem:[%s1 + $0x8] sm:$0xff]
  %vm37 = vnez %v35
  %vm38 = vnez %v36
  %v39 = vld [vmem:[%s0] sm:$0xf]
  %v40 = vld [vmem:[%s0 + $0x4] sm:$0xf]
  %v41 = vld [vmem:[%s0 + $0x8] sm:$0xf]
  %v42 = vld [vmem:[%s0 + $0xc] sm:$0xf]
  %v43 = vld [vmem:[%s0 + $0x10] sm:$0xf]
  %v44 = vld [vmem:[%s0 + $0x14] sm:$0xf]
  %v45 = vld [vmem:[%s0 + $0x18] sm:$0xf]
  %v46 = vld [vmem:[%s0 + $0x1c] sm:$0xf]
  %v47 = vld [vmem:[%s2] sm:$0xf]
  %v48 = vld [vmem:[%s2 + $0x4] sm:$0xf]
  %v57 = vunpack.c.l.b16 %v39
  %v58 = vunpack.c.l.b16 %v40
  %v59 = vunpack.c.l.b16 %v41
  %v60 = vunpack.c.l.b16 %v42
  %v61 = vunpack.c.l.b16 %v43
  %v62 = vunpack.c.l.b16 %v44
  %v63 = vunpack.c.l.b16 %v45
  %v64 = vunpack.c.l.b16 %v46
  %v65 = vpack.c.b16 %v58, %v57
  %v66 = vpack.c.b16 %v60, %v59
  %v67 = vpack.c.b16 %v62, %v61
  %v68 = vpack.c.b16 %v64, %v63
  %v71 = vunpack.c.l.b16 %v47
  %v72 = vunpack.c.l.b16 %v48
  %v73 = vpack.c.b16 %v72, %v71
  %vm75 = vcmask 130048
  %v77 = vsel %vm75, %v65, 0
  %v80 = vsel %vm75, %v66, 0
  %v83 = vsel %vm75, %v67, 0
  %v86 = vsel %vm75, %v68, 0
  %88 = vmatpush.bf16.msra.mxu0 0
  %89 = vmatpush.bf16.msra.mxu0 0
  %90 = vmatpush.bf16.msra.mxu0 0
  %91 = vmatpush.bf16.msra.mxu0 0
  %92 = vmatpush.bf16.msra.mxu0 0
  %93 = vmatpush.bf16.msra.mxu0 0
  %94 = vmatpush.bf16.msra.mxu0 0
  %95 = vmatpush.bf16.msra.mxu0 %v73
  %96 = vmatmul.bf16.gmra.mxu0 %v77
  %v97 = vpop.f32.mrf.mxu0
  %v98 = vadd.f32 0.0, %v97
  %v99 = vpop.f32.mrf.mxu0
  %v100 = vadd.f32 0.0, %v99
  %101 = vmatmul.bf16.gmra.mxu0 %v80
  %v102 = vpop.f32.mrf.mxu0
  %v103 = vadd.f32 0.0, %v102
  %v104 = vpop.f32.mrf.mxu0
  %v105 = vadd.f32 0.0, %v104
  %106 = vmatmul.bf16.gmra.mxu0 %v83
  %v107 = vpop.f32.mrf.mxu0
  %v108 = vadd.f32 0.0, %v107
  %v109 = vpop.f32.mrf.mxu0
  %v110 = vadd.f32 0.0, %v109
  %111 = vmatmul.bf16.gmra.mxu0 %v86
  %v112 = vpop.f32.mrf.mxu0
  %v113 = vadd.f32 0.0, %v112
  %v114 = vpop.f32.mrf.mxu0
  %v115 = vadd.f32 0.0, %v114
  %116 = vdwg.mxu0
  %v117 = vpack.c.bf16 %v98, %v98
  %v118 = vpack.c.bf16 %v100, %v100
  %v119 = vpack.c.bf16 %v103, %v103
  %v120 = vpack.c.bf16 %v105, %v105
  %v121 = vpack.c.bf16 %v108, %v108
  %v122 = vpack.c.bf16 %v110, %v110
  %v123 = vpack.c.bf16 %v113, %v113
  %v124 = vpack.c.bf16 %v115, %v115
  %v125 = vld [vmem:[%s3] sm:$0x1]
  %v127 = vsel %vm75, %v125, 0
  %129 = vmatpush.bf16.xpose.msra.mxu0 0
  %130 = vmatpush.bf16.xpose.msra.mxu0 0
  %131 = vmatpush.bf16.xpose.msra.mxu0 0
  %132 = vmatpush.bf16.xpose.msra.mxu0 0
  %133 = vmatpush.bf16.xpose.msra.mxu0 %v86
  %134 = vmatpush.bf16.xpose.msra.mxu0 %v83
  %135 = vmatpush.bf16.xpose.msra.mxu0 %v80
  %136 = vmatpush.bf16.xpose.msra.mxu0 %v77
  %137 = vmatmul.bf16.gmra.mxu0 %v127
  %v138 = vpop.f32.mrf.mxu0
  %v139 = vadd.f32 0.0, %v138
  %v140 = vpop.f32.mrf.mxu0
  %141 = vdwg.mxu0
  %143 = vset.pattern.permute.xlu0 64
  %144 = vperm.xlu0 %143, %v98
  %v145 = vpop.permute.xlu0 %144
  %148 = vset.pattern.permute.xlu0 64
  %149 = vperm.xlu0 %148, %v100
  %v150 = vpop.permute.xlu0 %149
  %153 = vset.pattern.permute.xlu0 64
  %154 = vperm.xlu0 %153, %v103
  %v155 = vpop.permute.xlu0 %154
  %158 = vset.pattern.permute.xlu0 64
  %159 = vperm.xlu0 %158, %v105
  %v160 = vpop.permute.xlu0 %159
  %163 = vset.pattern.permute.xlu0 64
  %164 = vperm.xlu0 %163, %v108
  %v165 = vpop.permute.xlu0 %164
  %168 = vset.pattern.permute.xlu0 64
  %169 = vperm.xlu0 %168, %v110
  %v170 = vpop.permute.xlu0 %169
  %173 = vset.pattern.permute.xlu0 64
  %174 = vperm.xlu0 %173, %v113
  %v175 = vpop.permute.xlu0 %174
  %178 = vset.pattern.permute.xlu0 64
  %179 = vperm.xlu0 %178, %v115
  %v180 = vpop.permute.xlu0 %179
  %v182 = vperm.slane %v139, 0
  %v183 = vadd.f32 %v145, %v182
  %v184 = vadd.f32 %v150, %v182
  %v185 = vadd.f32 %v155, %v182
  %v186 = vadd.f32 %v160, %v182
  %v187 = vadd.f32 %v165, %v182
  %v188 = vadd.f32 %v170, %v182
  %v189 = vadd.f32 %v175, %v182
  %v190 = vadd.f32 %v180, %v182
  %vm191 = vcmp.gt.f32.partialorder %v183, 0.0
  %vm192 = vcmp.gt.f32.partialorder %v184, 0.0
  %vm193 = vcmp.gt.f32.partialorder %v185, 0.0
  %vm194 = vcmp.gt.f32.partialorder %v186, 0.0
  %vm195 = vcmp.gt.f32.partialorder %v187, 0.0
  %vm196 = vcmp.gt.f32.partialorder %v188, 0.0
  %vm197 = vcmp.gt.f32.partialorder %v189, 0.0
  %vm198 = vcmp.gt.f32.partialorder %v190, 0.0
  %v199 = vmul.f32 %v183, 0.2
  %v200 = vmul.f32 %v184, 0.2
  %v201 = vmul.f32 %v185, 0.2
  %v202 = vmul.f32 %v186, 0.2
  %v203 = vmul.f32 %v187, 0.2
  %v204 = vmul.f32 %v188, 0.2
  %v205 = vmul.f32 %v189, 0.2
  %v206 = vmul.f32 %v190, 0.2
  %v207 = vsel %vm191, %v183, %v199
  %v208 = vsel %vm192, %v184, %v200
  %v209 = vsel %vm193, %v185, %v201
  %v210 = vsel %vm194, %v186, %v202
  %v211 = vsel %vm195, %v187, %v203
  %v212 = vsel %vm196, %v188, %v204
  %v213 = vsel %vm197, %v189, %v205
  %v214 = vsel %vm198, %v190, %v206
  %v215 = vsel %vm37, 16843009, 0
  %v216 = vsel %vm38, 16843009, 0
  %v217 = vunpack.c.0.s8 %v215
  %v218 = vunpack.c.1.s8 %v215
  %v219 = vunpack.c.2.s8 %v215
  %v220 = vunpack.c.3.s8 %v215
  %v221 = vunpack.c.0.s8 %v216
  %v222 = vunpack.c.1.s8 %v216
  %v223 = vunpack.c.2.s8 %v216
  %v224 = vunpack.c.3.s8 %v216
  %v225 = vpack.c.b16 %v217, %v217
  %v226 = vpack.c.b8 %v225, %v225
  %v227 = vpack.c.b16 %v218, %v218
  %v228 = vpack.c.b8 %v227, %v227
  %v229 = vpack.c.b16 %v219, %v219
  %v230 = vpack.c.b8 %v229, %v229
  %v231 = vpack.c.b16 %v220, %v220
  %v232 = vpack.c.b8 %v231, %v231
  %v233 = vpack.c.b16 %v221, %v221
  %v234 = vpack.c.b8 %v233, %v233
  %v235 = vpack.c.b16 %v222, %v222
  %v236 = vpack.c.b8 %v235, %v235
  %v237 = vpack.c.b16 %v223, %v223
  %v238 = vpack.c.b8 %v237, %v237
  %v239 = vpack.c.b16 %v224, %v224
  %v240 = vpack.c.b8 %v239, %v239
  %vm241 = vnez %v226
  %vm242 = vnez %v228
  %vm243 = vnez %v230
  %vm244 = vnez %v232
  %vm245 = vnez %v234
  %vm246 = vnez %v236
  %vm247 = vnez %v238
  %vm248 = vnez %v240
  %v249 = vsel %vm241, 16843009, 0
  %v250 = vsel %vm242, 16843009, 0
  %v251 = vsel %vm243, 16843009, 0
  %v252 = vsel %vm244, 16843009, 0
  %v253 = vsel %vm245, 16843009, 0
  %v254 = vsel %vm246, 16843009, 0
  %v255 = vsel %vm247, 16843009, 0
  %v256 = vsel %vm248, 16843009, 0
  %v257 = vunpack.c.0.s8 %v249
  %v258 = vunpack.c.0.s8 %v250
  %v259 = vunpack.c.0.s8 %v251
  %v260 = vunpack.c.0.s8 %v252
  %v261 = vunpack.c.0.s8 %v253
  %v262 = vunpack.c.0.s8 %v254
  %v263 = vunpack.c.0.s8 %v255
  %v264 = vunpack.c.0.s8 %v256
  %vm265 = vcmp.ne.s32.totalorder %v257, 0
  %vm266 = vcmp.ne.s32.totalorder %v258, 0
  %vm267 = vcmp.ne.s32.totalorder %v259, 0
  %vm268 = vcmp.ne.s32.totalorder %v260, 0
  %vm269 = vcmp.ne.s32.totalorder %v261, 0
  %vm270 = vcmp.ne.s32.totalorder %v262, 0
  %vm271 = vcmp.ne.s32.totalorder %v263, 0
  %vm272 = vcmp.ne.s32.totalorder %v264, 0
  %v273 = vsel %vm265, %v207, -1e+30
  %v274 = vsel %vm266, %v208, -1e+30
  %v275 = vsel %vm267, %v209, -1e+30
  %v276 = vsel %vm268, %v210, -1e+30
  %v277 = vsel %vm269, %v211, -1e+30
  %v278 = vsel %vm270, %v212, -1e+30
  %v279 = vsel %vm271, %v213, -1e+30
  %v280 = vsel %vm272, %v214, -1e+30
  %vm281 = vcmask 523264
  %v282 = vsel %vm281, %v273, -inf
  %283 = vmax.xlane.f32.xlu0 %v282
  %v284 = vpop.xlane.xlu0 %283
  %v285 = vsel %vm281, %v274, -inf
  %286 = vmax.xlane.f32.xlu0 %v285
  %v287 = vpop.xlane.xlu0 %286
  %v288 = vsel %vm281, %v275, -inf
  %289 = vmax.xlane.f32.xlu0 %v288
  %v290 = vpop.xlane.xlu0 %289
  %v291 = vsel %vm281, %v276, -inf
  %292 = vmax.xlane.f32.xlu0 %v291
  %v293 = vpop.xlane.xlu0 %292
  %v294 = vsel %vm281, %v277, -inf
  %295 = vmax.xlane.f32.xlu0 %v294
  %v296 = vpop.xlane.xlu0 %295
  %v297 = vsel %vm281, %v278, -inf
  %298 = vmax.xlane.f32.xlu0 %v297
  %v299 = vpop.xlane.xlu0 %298
  %v300 = vsel %vm281, %v279, -inf
  %301 = vmax.xlane.f32.xlu0 %v300
  %v302 = vpop.xlane.xlu0 %301
  %v303 = vsel %vm281, %v280, -inf
  %304 = vmax.xlane.f32.xlu0 %v303
  %v305 = vpop.xlane.xlu0 %304
  %v306 = vsub.f32 %v273, %v284
  %v307 = vsub.f32 %v274, %v287
  %v308 = vsub.f32 %v275, %v290
  %v309 = vsub.f32 %v276, %v293
  %v310 = vsub.f32 %v277, %v296
  %v311 = vsub.f32 %v278, %v299
  %v312 = vsub.f32 %v279, %v302
  %v313 = vsub.f32 %v280, %v305
  %v314 = vmul.f32 %v306, 1.442695
  %v315 = vpow.pop %v314
  %v316 = vmul.f32 %v307, 1.442695
  %v317 = vpow.pop %v316
  %v318 = vmul.f32 %v308, 1.442695
  %v319 = vpow.pop %v318
  %v320 = vmul.f32 %v309, 1.442695
  %v321 = vpow.pop %v320
  %v322 = vmul.f32 %v310, 1.442695
  %v323 = vpow.pop %v322
  %v324 = vmul.f32 %v311, 1.442695
  %v325 = vpow.pop %v324
  %v326 = vmul.f32 %v312, 1.442695
  %v327 = vpow.pop %v326
  %v328 = vmul.f32 %v313, 1.442695
  %v329 = vpow.pop %v328
  %v330 = vsel %vm281, %v315, 0.0
  %331 = vadd.xlane.f32.xlu0 %v330
  %v332 = vpop.xlane.xlu0 %331
  %v333 = vsel %vm281, %v317, 0.0
  %334 = vadd.xlane.f32.xlu0 %v333
  %v335 = vpop.xlane.xlu0 %334
  %v336 = vsel %vm281, %v319, 0.0
  %337 = vadd.xlane.f32.xlu0 %v336
  %v338 = vpop.xlane.xlu0 %337
  %v339 = vsel %vm281, %v321, 0.0
  %340 = vadd.xlane.f32.xlu0 %v339
  %v341 = vpop.xlane.xlu0 %340
  %v342 = vsel %vm281, %v323, 0.0
  %343 = vadd.xlane.f32.xlu0 %v342
  %v344 = vpop.xlane.xlu0 %343
  %v345 = vsel %vm281, %v325, 0.0
  %346 = vadd.xlane.f32.xlu0 %v345
  %v347 = vpop.xlane.xlu0 %346
  %v348 = vsel %vm281, %v327, 0.0
  %349 = vadd.xlane.f32.xlu0 %v348
  %v350 = vpop.xlane.xlu0 %349
  %v351 = vsel %vm281, %v329, 0.0
  %352 = vadd.xlane.f32.xlu0 %v351
  %v353 = vpop.xlane.xlu0 %352
  %v354 = vrcp.pop %v332
  %v355 = vrcp.pop %v335
  %v356 = vrcp.pop %v338
  %v357 = vrcp.pop %v341
  %v358 = vrcp.pop %v344
  %v359 = vrcp.pop %v347
  %v360 = vrcp.pop %v350
  %v361 = vrcp.pop %v353
  %v362 = vmul.f32 %v315, %v354
  %v363 = vmul.f32 %v317, %v355
  %v364 = vmul.f32 %v319, %v356
  %v365 = vmul.f32 %v321, %v357
  %v366 = vmul.f32 %v323, %v358
  %v367 = vmul.f32 %v325, %v359
  %v368 = vmul.f32 %v327, %v360
  %v369 = vmul.f32 %v329, %v361
  %v370 = vpack.c.bf16 %v363, %v362
  %v371 = vpack.c.bf16 %v365, %v364
  %v372 = vpack.c.bf16 %v367, %v366
  %v373 = vpack.c.bf16 %v369, %v368
  %v382 = vunpack.c.l.b16 %v117
  %v383 = vunpack.c.l.b16 %v118
  %v384 = vunpack.c.l.b16 %v119
  %v385 = vunpack.c.l.b16 %v120
  %v386 = vunpack.c.l.b16 %v121
  %v387 = vunpack.c.l.b16 %v122
  %v388 = vunpack.c.l.b16 %v123
  %v389 = vunpack.c.l.b16 %v124
  %v390 = vpack.c.b16 %v383, %v382
  %v391 = vpack.c.b16 %v385, %v384
  %v392 = vpack.c.b16 %v387, %v386
  %v393 = vpack.c.b16 %v389, %v388
  %v399 = vsel %vm281, %v370, 0
  %v402 = vsel %vm281, %v371, 0
  %v405 = vsel %vm281, %v372, 0
  %v408 = vsel %vm281, %v373, 0
  %410 = vmatpush.bf16.msra.mxu0 0
  %411 = vmatpush.bf16.msra.mxu0 0
  %412 = vmatpush.bf16.msra.mxu0 0
  %413 = vmatpush.bf16.msra.mxu0 0
  %414 = vmatpush.bf16.msra.mxu0 %v393
  %415 = vmatpush.bf16.msra.mxu0 %v392
  %416 = vmatpush.bf16.msra.mxu0 %v391
  %417 = vmatpush.bf16.msra.mxu0 %v390
  %418 = vmatmul.bf16.gmra.mxu0 %v399
  %v419 = vpop.f32.mrf.mxu0
  %v420 = vadd.f32 0.0, %v419
  %v421 = vpop.f32.mrf.mxu0
  %v422 = vadd.f32 0.0, %v421
  %423 = vmatmul.bf16.gmra.mxu0 %v402
  %v424 = vpop.f32.mrf.mxu0
  %v425 = vadd.f32 0.0, %v424
  %v426 = vpop.f32.mrf.mxu0
  %v427 = vadd.f32 0.0, %v426
  %428 = vmatmul.bf16.gmra.mxu0 %v405
  %v429 = vpop.f32.mrf.mxu0
  %v430 = vadd.f32 0.0, %v429
  %v431 = vpop.f32.mrf.mxu0
  %v432 = vadd.f32 0.0, %v431
  %433 = vmatmul.bf16.gmra.mxu0 %v408
  %v434 = vpop.f32.mrf.mxu0
  %v435 = vadd.f32 0.0, %v434
  %v436 = vpop.f32.mrf.mxu0
  %v437 = vadd.f32 0.0, %v436
  %438 = vdwg.mxu0
  %vm439 = vcmask 261120
  %440 = vst.msk [vmem:[#allocation2] sm:$0xff] %vm439, %v420
  %441 = vst.msk [vmem:[#allocation2 + $0x8] sm:$0xff] %vm439, %v422
  %442 = vst.msk [vmem:[#allocation2 + $0x10] sm:$0xff] %vm439, %v425
  %443 = vst.msk [vmem:[#allocation2 + $0x18] sm:$0xff] %vm439, %v427
  %444 = vst.msk [vmem:[#allocation2 + $0x20] sm:$0xff] %vm439, %v430
  %445 = vst.msk [vmem:[#allocation2 + $0x28] sm:$0xff] %vm439, %v432
  %446 = vst.msk [vmem:[#allocation2 + $0x30] sm:$0xff] %vm439, %v435
  %447 = vst.msk [vmem:[#allocation2 + $0x38] sm:$0xff] %vm439, %v437
  %448 = vset.pattern.permute.xlu0 65
  %449 = vperm.xlu0 %448, %v98
  %v450 = vpop.permute.xlu0 %449
  %452 = vset.pattern.permute.xlu0 65
  %453 = vperm.xlu0 %452, %v100
  %v454 = vpop.permute.xlu0 %453
  %456 = vset.pattern.permute.xlu0 65
  %457 = vperm.xlu0 %456, %v103
  %v458 = vpop.permute.xlu0 %457
  %460 = vset.pattern.permute.xlu0 65
  %461 = vperm.xlu0 %460, %v105
  %v462 = vpop.permute.xlu0 %461
  %464 = vset.pattern.permute.xlu0 65
  %465 = vperm.xlu0 %464, %v108
  %v466 = vpop.permute.xlu0 %465
  %468 = vset.pattern.permute.xlu0 65
  %469 = vperm.xlu0 %468, %v110
  %v470 = vpop.permute.xlu0 %469
  %472 = vset.pattern.permute.xlu0 65
  %473 = vperm.xlu0 %472, %v113
  %v474 = vpop.permute.xlu0 %473
  %476 = vset.pattern.permute.xlu0 65
  %477 = vperm.xlu0 %476, %v115
  %v478 = vpop.permute.xlu0 %477
  %v480 = vperm.slane %v139, 1
  %v481 = vadd.f32 %v450, %v480
  %v482 = vadd.f32 %v454, %v480
  %v483 = vadd.f32 %v458, %v480
  %v484 = vadd.f32 %v462, %v480
  %v485 = vadd.f32 %v466, %v480
  %v486 = vadd.f32 %v470, %v480
  %v487 = vadd.f32 %v474, %v480
  %v488 = vadd.f32 %v478, %v480
  %vm489 = vcmp.gt.f32.partialorder %v481, 0.0
  %vm490 = vcmp.gt.f32.partialorder %v482, 0.0
  %vm491 = vcmp.gt.f32.partialorder %v483, 0.0
  %vm492 = vcmp.gt.f32.partialorder %v484, 0.0
  %vm493 = vcmp.gt.f32.partialorder %v485, 0.0
  %vm494 = vcmp.gt.f32.partialorder %v486, 0.0
  %vm495 = vcmp.gt.f32.partialorder %v487, 0.0
  %vm496 = vcmp.gt.f32.partialorder %v488, 0.0
  %v497 = vmul.f32 %v481, 0.2
  %v498 = vmul.f32 %v482, 0.2
  %v499 = vmul.f32 %v483, 0.2
  %v500 = vmul.f32 %v484, 0.2
  %v501 = vmul.f32 %v485, 0.2
  %v502 = vmul.f32 %v486, 0.2
  %v503 = vmul.f32 %v487, 0.2
  %v504 = vmul.f32 %v488, 0.2
  %v505 = vsel %vm489, %v481, %v497
  %v506 = vsel %vm490, %v482, %v498
  %v507 = vsel %vm491, %v483, %v499
  %v508 = vsel %vm492, %v484, %v500
  %v509 = vsel %vm493, %v485, %v501
  %v510 = vsel %vm494, %v486, %v502
  %v511 = vsel %vm495, %v487, %v503
  %v512 = vsel %vm496, %v488, %v504
  %v513 = vsel %vm265, %v505, -1e+30
  %v514 = vsel %vm266, %v506, -1e+30
  %v515 = vsel %vm267, %v507, -1e+30
  %v516 = vsel %vm268, %v508, -1e+30
  %v517 = vsel %vm269, %v509, -1e+30
  %v518 = vsel %vm270, %v510, -1e+30
  %v519 = vsel %vm271, %v511, -1e+30
  %v520 = vsel %vm272, %v512, -1e+30
  %v521 = vsel %vm281, %v513, -inf
  %522 = vmax.xlane.f32.xlu0 %v521
  %v523 = vpop.xlane.xlu0 %522
  %v524 = vsel %vm281, %v514, -inf
  %525 = vmax.xlane.f32.xlu0 %v524
  %v526 = vpop.xlane.xlu0 %525
  %v527 = vsel %vm281, %v515, -inf
  %528 = vmax.xlane.f32.xlu0 %v527
  %v529 = vpop.xlane.xlu0 %528
  %v530 = vsel %vm281, %v516, -inf
  %531 = vmax.xlane.f32.xlu0 %v530
  %v532 = vpop.xlane.xlu0 %531
  %v533 = vsel %vm281, %v517, -inf
  %534 = vmax.xlane.f32.xlu0 %v533
  %v535 = vpop.xlane.xlu0 %534
  %v536 = vsel %vm281, %v518, -inf
  %537 = vmax.xlane.f32.xlu0 %v536
  %v538 = vpop.xlane.xlu0 %537
  %v539 = vsel %vm281, %v519, -inf
  %540 = vmax.xlane.f32.xlu0 %v539
  %v541 = vpop.xlane.xlu0 %540
  %v542 = vsel %vm281, %v520, -inf
  %543 = vmax.xlane.f32.xlu0 %v542
  %v544 = vpop.xlane.xlu0 %543
  %v545 = vsub.f32 %v513, %v523
  %v546 = vsub.f32 %v514, %v526
  %v547 = vsub.f32 %v515, %v529
  %v548 = vsub.f32 %v516, %v532
  %v549 = vsub.f32 %v517, %v535
  %v550 = vsub.f32 %v518, %v538
  %v551 = vsub.f32 %v519, %v541
  %v552 = vsub.f32 %v520, %v544
  %v553 = vmul.f32 %v545, 1.442695
  %v554 = vpow.pop %v553
  %v555 = vmul.f32 %v546, 1.442695
  %v556 = vpow.pop %v555
  %v557 = vmul.f32 %v547, 1.442695
  %v558 = vpow.pop %v557
  %v559 = vmul.f32 %v548, 1.442695
  %v560 = vpow.pop %v559
  %v561 = vmul.f32 %v549, 1.442695
  %v562 = vpow.pop %v561
  %v563 = vmul.f32 %v550, 1.442695
  %v564 = vpow.pop %v563
  %v565 = vmul.f32 %v551, 1.442695
  %v566 = vpow.pop %v565
  %v567 = vmul.f32 %v552, 1.442695
  %v568 = vpow.pop %v567
  %v569 = vsel %vm281, %v554, 0.0
  %570 = vadd.xlane.f32.xlu0 %v569
  %v571 = vpop.xlane.xlu0 %570
  %v572 = vsel %vm281, %v556, 0.0
  %573 = vadd.xlane.f32.xlu0 %v572
  %v574 = vpop.xlane.xlu0 %573
  %v575 = vsel %vm281, %v558, 0.0
  %576 = vadd.xlane.f32.xlu0 %v575
  %v577 = vpop.xlane.xlu0 %576
  %v578 = vsel %vm281, %v560, 0.0
  %579 = vadd.xlane.f32.xlu0 %v578
  %v580 = vpop.xlane.xlu0 %579
  %v581 = vsel %vm281, %v562, 0.0
  %582 = vadd.xlane.f32.xlu0 %v581
  %v583 = vpop.xlane.xlu0 %582
  %v584 = vsel %vm281, %v564, 0.0
  %585 = vadd.xlane.f32.xlu0 %v584
  %v586 = vpop.xlane.xlu0 %585
  %v587 = vsel %vm281, %v566, 0.0
  %588 = vadd.xlane.f32.xlu0 %v587
  %v589 = vpop.xlane.xlu0 %588
  %v590 = vsel %vm281, %v568, 0.0
  %591 = vadd.xlane.f32.xlu0 %v590
  %v592 = vpop.xlane.xlu0 %591
  %v593 = vrcp.pop %v571
  %v594 = vrcp.pop %v574
  %v595 = vrcp.pop %v577
  %v596 = vrcp.pop %v580
  %v597 = vrcp.pop %v583
  %v598 = vrcp.pop %v586
  %v599 = vrcp.pop %v589
  %v600 = vrcp.pop %v592
  %v601 = vmul.f32 %v554, %v593
  %v602 = vmul.f32 %v556, %v594
  %v603 = vmul.f32 %v558, %v595
  %v604 = vmul.f32 %v560, %v596
  %v605 = vmul.f32 %v562, %v597
  %v606 = vmul.f32 %v564, %v598
  %v607 = vmul.f32 %v566, %v599
  %v608 = vmul.f32 %v568, %v600
  %v609 = vpack.c.bf16 %v602, %v601
  %v610 = vpack.c.bf16 %v604, %v603
  %v611 = vpack.c.bf16 %v606, %v605
  %v612 = vpack.c.bf16 %v608, %v607
  %613 = vrot.lane.b32.xlu0 %v390, 96
  %v614 = vpop.permute.xlu0 %613
  %615 = vrot.lane.b32.xlu0 %v391, 96
  %v616 = vpop.permute.xlu0 %615
  %617 = vrot.lane.b32.xlu0 %v392, 96
  %v618 = vpop.permute.xlu0 %617
  %619 = vrot.lane.b32.xlu0 %v393, 96
  %v620 = vpop.permute.xlu0 %619
  %v626 = vsel %vm281, %v609, 0
  %v629 = vsel %vm281, %v610, 0
  %v632 = vsel %vm281, %v611, 0
  %v635 = vsel %vm281, %v612, 0
  %637 = vmatpush.bf16.msra.mxu0 0
  %638 = vmatpush.bf16.msra.mxu0 0
  %639 = vmatpush.bf16.msra.mxu0 0
  %640 = vmatpush.bf16.msra.mxu0 0
  %641 = vmatpush.bf16.msra.mxu0 %v620
  %642 = vmatpush.bf16.msra.mxu0 %v618
  %643 = vmatpush.bf16.msra.mxu0 %v616
  %644 = vmatpush.bf16.msra.mxu0 %v614
  %645 = vmatmul.bf16.gmra.mxu0 %v626
  %v646 = vpop.f32.mrf.mxu0
  %v647 = vadd.f32 0.0, %v646
  %v648 = vpop.f32.mrf.mxu0
  %v649 = vadd.f32 0.0, %v648
  %650 = vmatmul.bf16.gmra.mxu0 %v629
  %v651 = vpop.f32.mrf.mxu0
  %v652 = vadd.f32 0.0, %v651
  %v653 = vpop.f32.mrf.mxu0
  %v654 = vadd.f32 0.0, %v653
  %655 = vmatmul.bf16.gmra.mxu0 %v632
  %v656 = vpop.f32.mrf.mxu0
  %v657 = vadd.f32 0.0, %v656
  %v658 = vpop.f32.mrf.mxu0
  %v659 = vadd.f32 0.0, %v658
  %660 = vmatmul.bf16.gmra.mxu0 %v635
  %v661 = vpop.f32.mrf.mxu0
  %v662 = vadd.f32 0.0, %v661
  %v663 = vpop.f32.mrf.mxu0
  %v664 = vadd.f32 0.0, %v663
  %665 = vdwg.mxu0
  %674 = vrot.lane.b32.xlu0 %v647, 32
  %v675 = vpop.permute.xlu0 %674
  %676 = vrot.lane.b32.xlu0 %v649, 32
  %v677 = vpop.permute.xlu0 %676
  %678 = vrot.lane.b32.xlu0 %v652, 32
  %v679 = vpop.permute.xlu0 %678
  %680 = vrot.lane.b32.xlu0 %v654, 32
  %v681 = vpop.permute.xlu0 %680
  %682 = vrot.lane.b32.xlu0 %v657, 32
  %v683 = vpop.permute.xlu0 %682
  %684 = vrot.lane.b32.xlu0 %v659, 32
  %v685 = vpop.permute.xlu0 %684
  %686 = vrot.lane.b32.xlu0 %v662, 32
  %v687 = vpop.permute.xlu0 %686
  %688 = vrot.lane.b32.xlu0 %v664, 32
  %v689 = vpop.permute.xlu0 %688
  %vm698 = vcmask 523520
  %699 = vst.msk [vmem:[#allocation2] sm:$0xff] %vm698, %v675
  %700 = vst.msk [vmem:[#allocation2 + $0x8] sm:$0xff] %vm698, %v677
  %701 = vst.msk [vmem:[#allocation2 + $0x10] sm:$0xff] %vm698, %v679
  %702 = vst.msk [vmem:[#allocation2 + $0x18] sm:$0xff] %vm698, %v681
  %703 = vst.msk [vmem:[#allocation2 + $0x20] sm:$0xff] %vm698, %v683
  %704 = vst.msk [vmem:[#allocation2 + $0x28] sm:$0xff] %vm698, %v685
  %705 = vst.msk [vmem:[#allocation2 + $0x30] sm:$0xff] %vm698, %v687
  %706 = vst.msk [vmem:[#allocation2 + $0x38] sm:$0xff] %vm698, %v689
  %v707 = vld [vmem:[#allocation2] sm:$0xff]
  %v708 = vld [vmem:[#allocation2 + $0x8] sm:$0xff]
  %v709 = vld [vmem:[#allocation2 + $0x10] sm:$0xff]
  %v710 = vld [vmem:[#allocation2 + $0x18] sm:$0xff]
  %v711 = vld [vmem:[#allocation2 + $0x20] sm:$0xff]
  %v712 = vld [vmem:[#allocation2 + $0x28] sm:$0xff]
  %v713 = vld [vmem:[#allocation2 + $0x30] sm:$0xff]
  %v714 = vld [vmem:[#allocation2 + $0x38] sm:$0xff]
  %v715 = vsel %vm281, %v707, 0.0
  %v716 = vsel %vm281, %v708, 0.0
  %v717 = vadd.f32 %v715, %v716
  %v718 = vsel %vm281, %v709, 0.0
  %v719 = vadd.f32 %v717, %v718
  %v720 = vsel %vm281, %v710, 0.0
  %v721 = vadd.f32 %v719, %v720
  %v722 = vsel %vm281, %v711, 0.0
  %v723 = vadd.f32 %v721, %v722
  %v724 = vsel %vm281, %v712, 0.0
  %v725 = vadd.f32 %v723, %v724
  %v726 = vsel %vm281, %v713, 0.0
  %v727 = vadd.f32 %v725, %v726
  %v728 = vsel %vm281, %v714, 0.0
  %v729 = vadd.f32 %v727, %v728
  %v730 = vrot.slane %v729, 4
  %v731 = vadd.f32 %v729, %v730
  %v732 = vrot.slane %v731, 2
  %v733 = vadd.f32 %v731, %v732
  %v734 = vrot.slane %v733, 1
  %v735 = vadd.f32 %v733, %v734
  %v736 = vmul.f32 %v707, %v707
  %v737 = vmul.f32 %v708, %v708
  %v738 = vmul.f32 %v709, %v709
  %v739 = vmul.f32 %v710, %v710
  %v740 = vmul.f32 %v711, %v711
  %v741 = vmul.f32 %v712, %v712
  %v742 = vmul.f32 %v713, %v713
  %v743 = vmul.f32 %v714, %v714
  %v744 = vsel %vm281, %v736, 0.0
  %v745 = vsel %vm281, %v737, 0.0
  %v746 = vadd.f32 %v744, %v745
  %v747 = vsel %vm281, %v738, 0.0
  %v748 = vadd.f32 %v746, %v747
  %v749 = vsel %vm281, %v739, 0.0
  %v750 = vadd.f32 %v748, %v749
  %v751 = vsel %vm281, %v740, 0.0
  %v752 = vadd.f32 %v750, %v751
  %v753 = vsel %vm281, %v741, 0.0
  %v754 = vadd.f32 %v752, %v753
  %v755 = vsel %vm281, %v742, 0.0
  %v756 = vadd.f32 %v754, %v755
  %v757 = vsel %vm281, %v743, 0.0
  %v758 = vadd.f32 %v756, %v757
  %v759 = vrot.slane %v758, 4
  %v760 = vadd.f32 %v758, %v759
  %v761 = vrot.slane %v760, 2
  %v762 = vadd.f32 %v760, %v761
  %v763 = vrot.slane %v762, 1
  %v764 = vadd.f32 %v762, %v763
  %v765 = vmul.f32 %v735, 0.015625
  %v766 = vmul.f32 %v764, 0.015625
  %v767 = vmul.f32 %v765, %v765
  %v768 = vsub.f32 %v766, %v767
  %v769 = vld [vmem:[%s4] sm:$0x1]
  %v770 = vsub.f32 %v707, %v765
  %v771 = vsub.f32 %v708, %v765
  %v772 = vsub.f32 %v709, %v765
  %v773 = vsub.f32 %v710, %v765
  %v774 = vsub.f32 %v711, %v765
  %v775 = vsub.f32 %v712, %v765
  %v776 = vsub.f32 %v713, %v765
  %v777 = vsub.f32 %v714, %v765
  %v779 = vperm.slane %v769, 0
  %v781 = vmul.f32 %v779, %v770
  %v782 = vmul.f32 %v779, %v771
  %v783 = vmul.f32 %v779, %v772
  %v784 = vmul.f32 %v779, %v773
  %v785 = vmul.f32 %v779, %v774
  %v786 = vmul.f32 %v779, %v775
  %v787 = vmul.f32 %v779, %v776
  %v788 = vmul.f32 %v779, %v777
  %v789 = vadd.f32 %v768, 1e-05
  %v790 = vrsqrt.pop %v789
  %v791 = vmul.f32 %v790, %v789
  %v792 = vmul.f32 %v791, %v790
  %v793 = vmul.f32 0.5, %v792
  %v794 = vsub.f32 1.5, %v793
  %v795 = vmul.f32 %v790, %v794
  %vm796 = vweird.f32 %v789
  %vm797 = vweird.f32 %v790
  %vm798 = vmor %vm796, %vm797
  %v799 = vsel %vm798, %v790, %v795
  %v800 = vmul.f32 %v781, %v799
  %v801 = vmul.f32 %v782, %v799
  %v802 = vmul.f32 %v783, %v799
  %v803 = vmul.f32 %v784, %v799
  %v804 = vmul.f32 %v785, %v799
  %v805 = vmul.f32 %v786, %v799
  %v806 = vmul.f32 %v787, %v799
  %v807 = vmul.f32 %v788, %v799
  %v808 = vld [vmem:[%s5] sm:$0x1]
  %v810 = vperm.slane %v808, 0
  %v812 = vadd.f32 %v800, %v810
  %v813 = vadd.f32 %v801, %v810
  %v814 = vadd.f32 %v802, %v810
  %v815 = vadd.f32 %v803, %v810
  %v816 = vadd.f32 %v804, %v810
  %v817 = vadd.f32 %v805, %v810
  %v818 = vadd.f32 %v806, %v810
  %v819 = vadd.f32 %v807, %v810
  %vm820 = vcmp.gt.f32.partialorder %v812, 0.0
  %vm821 = vcmp.gt.f32.partialorder %v813, 0.0
  %vm822 = vcmp.gt.f32.partialorder %v814, 0.0
  %vm823 = vcmp.gt.f32.partialorder %v815, 0.0
  %vm824 = vcmp.gt.f32.partialorder %v816, 0.0
  %vm825 = vcmp.gt.f32.partialorder %v817, 0.0
  %vm826 = vcmp.gt.f32.partialorder %v818, 0.0
  %vm827 = vcmp.gt.f32.partialorder %v819, 0.0
  %v828 = vmin.f32 %v812, 0.0
  %v829 = vmin.f32 %v813, 0.0
  %v830 = vmin.f32 %v814, 0.0
  %v831 = vmin.f32 %v815, 0.0
  %v832 = vmin.f32 %v816, 0.0
  %v833 = vmin.f32 %v817, 0.0
  %v834 = vmin.f32 %v818, 0.0
  %v835 = vmin.f32 %v819, 0.0
  %v836 = vmul.f32 %v828, 1.442695
  %v837 = vpow.pop %v836
  %v838 = vmul.f32 %v829, 1.442695
  %v839 = vpow.pop %v838
  %v840 = vmul.f32 %v830, 1.442695
  %v841 = vpow.pop %v840
  %v842 = vmul.f32 %v831, 1.442695
  %v843 = vpow.pop %v842
  %v844 = vmul.f32 %v832, 1.442695
  %v845 = vpow.pop %v844
  %v846 = vmul.f32 %v833, 1.442695
  %v847 = vpow.pop %v846
  %v848 = vmul.f32 %v834, 1.442695
  %v849 = vpow.pop %v848
  %v850 = vmul.f32 %v835, 1.442695
  %v851 = vpow.pop %v850
  %v852 = vsub.f32 %v837, 1.0
  %v853 = vsub.f32 %v839, 1.0
  %v854 = vsub.f32 %v841, 1.0
  %v855 = vsub.f32 %v843, 1.0
  %v856 = vsub.f32 %v845, 1.0
  %v857 = vsub.f32 %v847, 1.0
  %v858 = vsub.f32 %v849, 1.0
  %v859 = vsub.f32 %v851, 1.0
  %v860 = vsel %vm820, %v812, %v852
  %v861 = vsel %vm821, %v813, %v853
  %v862 = vsel %vm822, %v814, %v854
  %v863 = vsel %vm823, %v815, %v855
  %v864 = vsel %vm824, %v816, %v856
  %v865 = vsel %vm825, %v817, %v857
  %v866 = vsel %vm826, %v818, %v858
  %v867 = vsel %vm827, %v819, %v859
  %v868 = vpack.c.bf16 %v861, %v860
  %v869 = vpack.c.bf16 %v863, %v862
  %v870 = vpack.c.bf16 %v865, %v864
  %v871 = vpack.c.bf16 %v867, %v866
  %v872 = vld [vmem:[%s6] sm:$0xf]
  %v873 = vld [vmem:[%s6 + $0x4] sm:$0xf]
  %v874 = vld [vmem:[%s6 + $0x8] sm:$0xf]
  %v875 = vld [vmem:[%s6 + $0xc] sm:$0xf]
  %v876 = vld [vmem:[%s6 + $0x10] sm:$0xf]
  %v877 = vld [vmem:[%s6 + $0x14] sm:$0xf]
  %v878 = vld [vmem:[%s6 + $0x18] sm:$0xf]
  %v879 = vld [vmem:[%s6 + $0x1c] sm:$0xf]
  %v888 = vunpack.c.l.b16 %v872
  %v889 = vunpack.c.l.b16 %v873
  %v890 = vunpack.c.l.b16 %v874
  %v891 = vunpack.c.l.b16 %v875
  %v892 = vunpack.c.l.b16 %v876
  %v893 = vunpack.c.l.b16 %v877
  %v894 = vunpack.c.l.b16 %v878
  %v895 = vunpack.c.l.b16 %v879
  %v896 = vpack.c.b16 %v889, %v888
  %v897 = vpack.c.b16 %v891, %v890
  %v898 = vpack.c.b16 %v893, %v892
  %v899 = vpack.c.b16 %v895, %v894
  %v905 = vsel %vm281, %v868, 0
  %v908 = vsel %vm281, %v869, 0
  %v911 = vsel %vm281, %v870, 0
  %v914 = vsel %vm281, %v871, 0
  %916 = vmatpush.bf16.msra.mxu0 0
  %917 = vmatpush.bf16.msra.mxu0 0
  %918 = vmatpush.bf16.msra.mxu0 0
  %919 = vmatpush.bf16.msra.mxu0 0
  %920 = vmatpush.bf16.msra.mxu0 %v899
  %921 = vmatpush.bf16.msra.mxu0 %v898
  %922 = vmatpush.bf16.msra.mxu0 %v897
  %923 = vmatpush.bf16.msra.mxu0 %v896
  %924 = vmatmul.bf16.gmra.mxu0 %v905
  %v925 = vpop.f32.mrf.mxu0
  %v926 = vadd.f32 0.0, %v925
  %v927 = vpop.f32.mrf.mxu0
  %v928 = vadd.f32 0.0, %v927
  %929 = vmatmul.bf16.gmra.mxu0 %v908
  %v930 = vpop.f32.mrf.mxu0
  %v931 = vadd.f32 0.0, %v930
  %v932 = vpop.f32.mrf.mxu0
  %v933 = vadd.f32 0.0, %v932
  %934 = vmatmul.bf16.gmra.mxu0 %v911
  %v935 = vpop.f32.mrf.mxu0
  %v936 = vadd.f32 0.0, %v935
  %v937 = vpop.f32.mrf.mxu0
  %v938 = vadd.f32 0.0, %v937
  %939 = vmatmul.bf16.gmra.mxu0 %v914
  %v940 = vpop.f32.mrf.mxu0
  %v941 = vadd.f32 0.0, %v940
  %v942 = vpop.f32.mrf.mxu0
  %v943 = vadd.f32 0.0, %v942
  %944 = vdwg.mxu0
  %v945 = vld [vmem:[%s7] sm:$0x1]
  %v947 = vsel %vm281, %v945, 0
  %949 = vmatpush.bf16.xpose.msra.mxu0 0
  %950 = vmatpush.bf16.xpose.msra.mxu0 0
  %951 = vmatpush.bf16.xpose.msra.mxu0 0
  %952 = vmatpush.bf16.xpose.msra.mxu0 0
  %953 = vmatpush.bf16.xpose.msra.mxu0 %v914
  %954 = vmatpush.bf16.xpose.msra.mxu0 %v911
  %955 = vmatpush.bf16.xpose.msra.mxu0 %v908
  %956 = vmatpush.bf16.xpose.msra.mxu0 %v905
  %957 = vmatmul.bf16.gmra.mxu0 %v947
  %v958 = vpop.f32.mrf.mxu0
  %v959 = vadd.f32 0.0, %v958
  %v960 = vpop.f32.mrf.mxu0
  %961 = vdwg.mxu0
  %963 = vset.pattern.permute.xlu0 8
  %964 = vperm.xlu0 %963, %v926
  %v965 = vpop.permute.xlu0 %964
  %968 = vset.pattern.permute.xlu0 8
  %969 = vperm.xlu0 %968, %v928
  %v970 = vpop.permute.xlu0 %969
  %973 = vset.pattern.permute.xlu0 8
  %974 = vperm.xlu0 %973, %v931
  %v975 = vpop.permute.xlu0 %974
  %978 = vset.pattern.permute.xlu0 8
  %979 = vperm.xlu0 %978, %v933
  %v980 = vpop.permute.xlu0 %979
  %983 = vset.pattern.permute.xlu0 8
  %984 = vperm.xlu0 %983, %v936
  %v985 = vpop.permute.xlu0 %984
  %988 = vset.pattern.permute.xlu0 8
  %989 = vperm.xlu0 %988, %v938
  %v990 = vpop.permute.xlu0 %989
  %993 = vset.pattern.permute.xlu0 8
  %994 = vperm.xlu0 %993, %v941
  %v995 = vpop.permute.xlu0 %994
  %998 = vset.pattern.permute.xlu0 8
  %999 = vperm.xlu0 %998, %v943
  %v1000 = vpop.permute.xlu0 %999
  %v1002 = vperm.slane %v959, 0
  %v1003 = vadd.f32 %v965, %v1002
  %v1004 = vadd.f32 %v970, %v1002
  %v1005 = vadd.f32 %v975, %v1002
  %v1006 = vadd.f32 %v980, %v1002
  %v1007 = vadd.f32 %v985, %v1002
  %v1008 = vadd.f32 %v990, %v1002
  %v1009 = vadd.f32 %v995, %v1002
  %v1010 = vadd.f32 %v1000, %v1002
  %vm1011 = vcmp.gt.f32.partialorder %v1003, 0.0
  %vm1012 = vcmp.gt.f32.partialorder %v1004, 0.0
  %vm1013 = vcmp.gt.f32.partialorder %v1005, 0.0
  %vm1014 = vcmp.gt.f32.partialorder %v1006, 0.0
  %vm1015 = vcmp.gt.f32.partialorder %v1007, 0.0
  %vm1016 = vcmp.gt.f32.partialorder %v1008, 0.0
  %vm1017 = vcmp.gt.f32.partialorder %v1009, 0.0
  %vm1018 = vcmp.gt.f32.partialorder %v1010, 0.0
  %v1019 = vmul.f32 %v1003, 0.2
  %v1020 = vmul.f32 %v1004, 0.2
  %v1021 = vmul.f32 %v1005, 0.2
  %v1022 = vmul.f32 %v1006, 0.2
  %v1023 = vmul.f32 %v1007, 0.2
  %v1024 = vmul.f32 %v1008, 0.2
  %v1025 = vmul.f32 %v1009, 0.2
  %v1026 = vmul.f32 %v1010, 0.2
  %v1027 = vsel %vm1011, %v1003, %v1019
  %v1028 = vsel %vm1012, %v1004, %v1020
  %v1029 = vsel %vm1013, %v1005, %v1021
  %v1030 = vsel %vm1014, %v1006, %v1022
  %v1031 = vsel %vm1015, %v1007, %v1023
  %v1032 = vsel %vm1016, %v1008, %v1024
  %v1033 = vsel %vm1017, %v1009, %v1025
  %v1034 = vsel %vm1018, %v1010, %v1026
  %v1035 = vsel %vm265, %v1027, -1e+30
  %v1036 = vsel %vm266, %v1028, -1e+30
  %v1037 = vsel %vm267, %v1029, -1e+30
  %v1038 = vsel %vm268, %v1030, -1e+30
  %v1039 = vsel %vm269, %v1031, -1e+30
  %v1040 = vsel %vm270, %v1032, -1e+30
  %v1041 = vsel %vm271, %v1033, -1e+30
  %v1042 = vsel %vm272, %v1034, -1e+30
  %v1043 = vsel %vm281, %v1035, -inf
  %1044 = vmax.xlane.f32.xlu0 %v1043
  %v1045 = vpop.xlane.xlu0 %1044
  %v1046 = vsel %vm281, %v1036, -inf
  %1047 = vmax.xlane.f32.xlu0 %v1046
  %v1048 = vpop.xlane.xlu0 %1047
  %v1049 = vsel %vm281, %v1037, -inf
  %1050 = vmax.xlane.f32.xlu0 %v1049
  %v1051 = vpop.xlane.xlu0 %1050
  %v1052 = vsel %vm281, %v1038, -inf
  %1053 = vmax.xlane.f32.xlu0 %v1052
  %v1054 = vpop.xlane.xlu0 %1053
  %v1055 = vsel %vm281, %v1039, -inf
  %1056 = vmax.xlane.f32.xlu0 %v1055
  %v1057 = vpop.xlane.xlu0 %1056
  %v1058 = vsel %vm281, %v1040, -inf
  %1059 = vmax.xlane.f32.xlu0 %v1058
  %v1060 = vpop.xlane.xlu0 %1059
  %v1061 = vsel %vm281, %v1041, -inf
  %1062 = vmax.xlane.f32.xlu0 %v1061
  %v1063 = vpop.xlane.xlu0 %1062
  %v1064 = vsel %vm281, %v1042, -inf
  %1065 = vmax.xlane.f32.xlu0 %v1064
  %v1066 = vpop.xlane.xlu0 %1065
  %v1067 = vsub.f32 %v1035, %v1045
  %v1068 = vsub.f32 %v1036, %v1048
  %v1069 = vsub.f32 %v1037, %v1051
  %v1070 = vsub.f32 %v1038, %v1054
  %v1071 = vsub.f32 %v1039, %v1057
  %v1072 = vsub.f32 %v1040, %v1060
  %v1073 = vsub.f32 %v1041, %v1063
  %v1074 = vsub.f32 %v1042, %v1066
  %v1075 = vmul.f32 %v1067, 1.442695
  %v1076 = vpow.pop %v1075
  %v1077 = vmul.f32 %v1068, 1.442695
  %v1078 = vpow.pop %v1077
  %v1079 = vmul.f32 %v1069, 1.442695
  %v1080 = vpow.pop %v1079
  %v1081 = vmul.f32 %v1070, 1.442695
  %v1082 = vpow.pop %v1081
  %v1083 = vmul.f32 %v1071, 1.442695
  %v1084 = vpow.pop %v1083
  %v1085 = vmul.f32 %v1072, 1.442695
  %v1086 = vpow.pop %v1085
  %v1087 = vmul.f32 %v1073, 1.442695
  %v1088 = vpow.pop %v1087
  %v1089 = vmul.f32 %v1074, 1.442695
  %v1090 = vpow.pop %v1089
  %v1091 = vsel %vm281, %v1076, 0.0
  %1092 = vadd.xlane.f32.xlu0 %v1091
  %v1093 = vpop.xlane.xlu0 %1092
  %v1094 = vsel %vm281, %v1078, 0.0
  %1095 = vadd.xlane.f32.xlu0 %v1094
  %v1096 = vpop.xlane.xlu0 %1095
  %v1097 = vsel %vm281, %v1080, 0.0
  %1098 = vadd.xlane.f32.xlu0 %v1097
  %v1099 = vpop.xlane.xlu0 %1098
  %v1100 = vsel %vm281, %v1082, 0.0
  %1101 = vadd.xlane.f32.xlu0 %v1100
  %v1102 = vpop.xlane.xlu0 %1101
  %v1103 = vsel %vm281, %v1084, 0.0
  %1104 = vadd.xlane.f32.xlu0 %v1103
  %v1105 = vpop.xlane.xlu0 %1104
  %v1106 = vsel %vm281, %v1086, 0.0
  %1107 = vadd.xlane.f32.xlu0 %v1106
  %v1108 = vpop.xlane.xlu0 %1107
  %v1109 = vsel %vm281, %v1088, 0.0
  %1110 = vadd.xlane.f32.xlu0 %v1109
  %v1111 = vpop.xlane.xlu0 %1110
  %v1112 = vsel %vm281, %v1090, 0.0
  %1113 = vadd.xlane.f32.xlu0 %v1112
  %v1114 = vpop.xlane.xlu0 %1113
  %v1115 = vrcp.pop %v1093
  %v1116 = vrcp.pop %v1096
  %v1117 = vrcp.pop %v1099
  %v1118 = vrcp.pop %v1102
  %v1119 = vrcp.pop %v1105
  %v1120 = vrcp.pop %v1108
  %v1121 = vrcp.pop %v1111
  %v1122 = vrcp.pop %v1114
  %v1123 = vmul.f32 %v1076, %v1115
  %v1124 = vmul.f32 %v1078, %v1116
  %v1125 = vmul.f32 %v1080, %v1117
  %v1126 = vmul.f32 %v1082, %v1118
  %v1127 = vmul.f32 %v1084, %v1119
  %v1128 = vmul.f32 %v1086, %v1120
  %v1129 = vmul.f32 %v1088, %v1121
  %v1130 = vmul.f32 %v1090, %v1122
  %v1131 = vpack.c.bf16 %v1124, %v1123
  %v1132 = vpack.c.bf16 %v1126, %v1125
  %v1133 = vpack.c.bf16 %v1128, %v1127
  %v1134 = vpack.c.bf16 %v1130, %v1129
  %v1135 = vpack.c.bf16 %v928, %v926
  %v1136 = vpack.c.bf16 %v933, %v931
  %v1137 = vpack.c.bf16 %v938, %v936
  %v1138 = vpack.c.bf16 %v943, %v941
  %v1139 = vld [vmem:[%s8] sm:$0x1]
  %v1141 = vperm.slane %v1139, 0
  %v1144 = vsel %vm281, %v1131, 0
  %v1147 = vsel %vm281, %v1132, 0
  %v1150 = vsel %vm281, %v1133, 0
  %v1153 = vsel %vm281, %v1134, 0
  %1155 = vmatpush.bf16.msra.mxu0 0
  %1156 = vmatpush.bf16.msra.mxu0 0
  %1157 = vmatpush.bf16.msra.mxu0 0
  %1158 = vmatpush.bf16.msra.mxu0 0
  %1159 = vmatpush.bf16.msra.mxu0 %v1138
  %1160 = vmatpush.bf16.msra.mxu0 %v1137
  %1161 = vmatpush.bf16.msra.mxu0 %v1136
  %1162 = vmatpush.bf16.msra.mxu0 %v1135
  %1163 = vmatmul.bf16.gmra.mxu0 %v1144
  %v1164 = vpop.f32.mrf.mxu0
  %v1165 = vadd.f32 %v1141, %v1164
  %v1166 = vpop.f32.mrf.mxu0
  %v1167 = vadd.f32 %v1141, %v1166
  %1168 = vmatmul.bf16.gmra.mxu0 %v1147
  %v1169 = vpop.f32.mrf.mxu0
  %v1170 = vadd.f32 %v1141, %v1169
  %v1171 = vpop.f32.mrf.mxu0
  %v1172 = vadd.f32 %v1141, %v1171
  %1173 = vmatmul.bf16.gmra.mxu0 %v1150
  %v1174 = vpop.f32.mrf.mxu0
  %v1175 = vadd.f32 %v1141, %v1174
  %v1176 = vpop.f32.mrf.mxu0
  %v1177 = vadd.f32 %v1141, %v1176
  %1178 = vmatmul.bf16.gmra.mxu0 %v1153
  %v1179 = vpop.f32.mrf.mxu0
  %v1180 = vadd.f32 %v1141, %v1179
  %v1181 = vpop.f32.mrf.mxu0
  %v1182 = vadd.f32 %v1141, %v1181
  %1183 = vdwg.mxu0
  %1184 = vst [vmem:[%s9] sm:$0xff] %v1165
  %1185 = vst [vmem:[%s9 + $0x8] sm:$0xff] %v1167
  %1186 = vst [vmem:[%s9 + $0x10] sm:$0xff] %v1170
  %1187 = vst [vmem:[%s9 + $0x18] sm:$0xff] %v1172
  %1188 = vst [vmem:[%s9 + $0x20] sm:$0xff] %v1175
  %1189 = vst [vmem:[%s9 + $0x28] sm:$0xff] %v1177
  %1190 = vst [vmem:[%s9 + $0x30] sm:$0xff] %v1180
  %1191 = vst [vmem:[%s9 + $0x38] sm:$0xff] %v1182
  // Predicated region
  $region38: #{gat_forward.1} parent=0 // pred_check
    _
  $region39: #{gat_forward.1} parent=0 // pred_check_branch
    %1193 = sbr.rel (0) target = $region41
  $region40: #{gat_forward.1} parent=0 // pred_region
    _
  $region41: #{gat_forward.1} parent=0 // pred_fallthru
    _
  // Predicated region
  $region42: #{gat_forward.1} parent=0 // pred_check
    _
  $region43: #{gat_forward.1} parent=0 // pred_check_branch
    %1195 = sbr.rel (0) target = $region45
  $region44: #{gat_forward.1} parent=0 // pred_region
    _
  $region45: #{gat_forward.1} parent=0 // pred_fallthru
    _

</llo_original>
